<compile_context>
chip_gen: v7x
topology: tpu7x:2x2x1
jax: 0.10.0
libtpu: 0.0.40
codegen_flags: <defaults>
</compile_context>

<pallas_src>
import functools

import jax
import jax.numpy as jnp
import numpy as np
from jax.experimental import pallas as pl
from jax.experimental.pallas import tpu as pltpu

_EPS = 1e-5
_LANES = 128


def _round_up(x, m):
    return (x + m - 1) // m * m


def _pick_tile(r, max_tile):
    # >= 2 token tiles whenever possible so ("parallel",) can use both v7x TCs;
    # otherwise a single lane-aligned tile.
    if r >= 2 * _LANES:
        tile = _round_up((r + 1) // 2, _LANES)
    else:
        tile = _round_up(max(r, 1), _LANES)
    return min(max_tile, tile)


def _lane_partial_sums(h):
    """(C, T) f32 -> lane-dense partial (sum, sum_sq), each (C, 128).

    Pure VPU adds over vreg-aligned 128-lane chunks; no cross-lane reduce.
    """
    c, t = h.shape
    s = jnp.zeros((c, _LANES), jnp.float32)
    ss = jnp.zeros((c, _LANES), jnp.float32)
    for j in range(t // _LANES):
        blk = h[:, j * _LANES:(j + 1) * _LANES]
        s = s + blk
        ss = ss + blk * blk
    return s, ss


# ----------------------------- kernels ------------------------------------- #

def _conv_stats_kernel(x_ref, w_ref, h_ref, st_ref):
    # x_ref: (K, T) bf16 tokens-on-lanes; w_ref: (Cout, K) bf16 (resident);
    # h_ref: (Cout, T) bf16 raw conv output; st_ref: (1, 2*Cout, 128) f32.
    cout = w_ref.shape[0]
    h = jnp.dot(w_ref[...], x_ref[...], preferred_element_type=jnp.float32)
    h_ref[...] = h.astype(h_ref.dtype)
    s, ss = _lane_partial_sums(h)
    st_ref[0, :cout, :] = s
    st_ref[0, cout:, :] = ss


def _bn_relu_conv_stats_kernel(h_ref, sc_ref, of_ref, w_ref, o_ref, st_ref,
                               *, total, need_mask):
    # Fused: BN2-apply + ReLU -> 1x1 conv3 matmul -> BN3 lane-dense partials.
    cout = w_ref.shape[0]
    a = jnp.maximum(h_ref[...].astype(jnp.float32) * sc_ref[...] + of_ref[...],
                    0.0)
    if need_mask:  # compiled in only when the token axis is zero-padded
        t = a.shape[1]
        col = (jax.lax.broadcasted_iota(jnp.int32, (1, t), 1)
               + pl.program_id(0) * t)
        a = jnp.where(col < total, a, 0.0)
    h3 = jnp.dot(w_ref[...], a.astype(w_ref.dtype),
                 preferred_element_type=jnp.float32)
    o_ref[...] = h3.astype(o_ref.dtype)
    s, ss = _lane_partial_sums(h3)
    st_ref[0, :cout, :] = s
    st_ref[0, cout:, :] = ss


# ----------------------------- pallas wrappers ------------------------------ #

def _compiler_params():
    # 32 MiB is within the scoped-VMEM budget of v5e/v6e/v7x; our
    # double-buffered footprint (K<=36, Cout<=8, tile<=2048, bf16) is ~MBs.
    return pltpu.CompilerParams(dimension_semantics=("parallel",),
                                vmem_limit_bytes=32 * 1024 * 1024)


def _conv_with_stats(x_cm, w, tile):
    # x_cm: (K, Rp) bf16, w: (Cout, K) bf16 -> h (Cout, Rp) bf16,
    # stats (n_t, 2*Cout, 128) f32.
    k, rp = x_cm.shape
    cout = w.shape[0]
    n_t = rp // tile
    flops = 2 * cout * k * rp + 4 * cout * rp
    bytes_accessed = (2 * (k * rp + cout * k + cout * rp)
                      + 4 * n_t * 2 * cout * _LANES)
    return pl.pallas_call(
        _conv_stats_kernel,
        grid=(n_t,),
        in_specs=[pl.BlockSpec((k, tile), lambda i: (0, i)),
                  pl.BlockSpec((cout, k), lambda i: (0, 0))],
        out_specs=(pl.BlockSpec((cout, tile), lambda i: (0, i)),
                   pl.BlockSpec((1, 2 * cout, _LANES), lambda i: (i, 0, 0))),
        out_shape=(jax.ShapeDtypeStruct((cout, rp), jnp.bfloat16),
                   jax.ShapeDtypeStruct((n_t, 2 * cout, _LANES), jnp.float32)),
        compiler_params=_compiler_params(),
        cost_estimate=pl.CostEstimate(flops=flops, transcendentals=0,
                                      bytes_accessed=bytes_accessed),
    )(x_cm, w)


def _bn_relu_conv_with_stats(h_cm, scale, offset, w, tile, total):
    # h_cm: (C, Rp) bf16; scale/offset: (C, 1) f32; w: (Cout, C) bf16.
    c, rp = h_cm.shape
    cout = w.shape[0]
    n_t = rp // tile
    kern = functools.partial(_bn_relu_conv_stats_kernel, total=total,
                             need_mask=(rp != total))
    flops = 2 * cout * c * rp + 6 * c * rp + 4 * cout * rp
    bytes_accessed = (2 * (c * rp + cout * c + cout * rp)
                      + 4 * (2 * c + n_t * 2 * cout * _LANES))
    return pl.pallas_call(
        kern,
        grid=(n_t,),
        in_specs=[pl.BlockSpec((c, tile), lambda i: (0, i)),
                  pl.BlockSpec((c, 1), lambda i: (0, 0)),
                  pl.BlockSpec((c, 1), lambda i: (0, 0)),
                  pl.BlockSpec((cout, c), lambda i: (0, 0))],
        out_specs=(pl.BlockSpec((cout, tile), lambda i: (0, i)),
                   pl.BlockSpec((1, 2 * cout, _LANES), lambda i: (i, 0, 0))),
        out_shape=(jax.ShapeDtypeStruct((cout, rp), jnp.bfloat16),
                   jax.ShapeDtypeStruct((n_t, 2 * cout, _LANES), jnp.float32)),
        compiler_params=_compiler_params(),
        cost_estimate=pl.CostEstimate(flops=flops, transcendentals=0,
                                      bytes_accessed=bytes_accessed),
    )(h_cm, scale, offset, w)


def _fold_bn(stats, count, gamma, beta):
    # stats: (n_t, 2*C, 128) per-tile lane-dense partial (sum, sum_sq).
    c = gamma.shape[0]
    tot = jnp.sum(stats, axis=(0, 2))              # (2*C,)
    mean = tot[:c] / count
    var = tot[c:] / count - mean * mean            # biased var (training BN)
    scale = gamma * jax.lax.rsqrt(var + _EPS)
    offset = beta - mean * scale
    return scale.reshape(-1, 1), offset.reshape(-1, 1)


# ----------------------------- forward -------------------------------------- #

def dilation_forward(x_nchw, params, *, dilation, padding, max_tile=2048):
    (w1, g1, b1, w2f, g2, b2, w3, g3, b3) = params
    n, cin, h, w = x_nchw.shape
    cmid = w1.shape[0]
    cout = w3.shape[0]
    d, p = dilation, padding
    ho = (h + 2 * p - 2 * d - 1) // 2 + 1
    wo = (w + 2 * p - 2 * d - 1) // 2 + 1

    r1 = n * h * w
    r2 = n * ho * wo
    t1 = _pick_tile(r1, max_tile)
    t2 = _pick_tile(r2, max_tile)
    r1p = _round_up(r1, t1)
    r2p = _round_up(r2, t2)

    # NCHW -> (C, tokens): tokens on the lane axis; zero-pad tokens to tiles.
    # (Padded token columns stay exactly zero through the bias-free convs, so
    # they contribute nothing to BN1/BN2 sums; BN3 is protected by the mask.)
    x_cm = jnp.transpose(x_nchw, (1, 0, 2, 3)).reshape(cin, r1)
    x_cm = jnp.pad(x_cm, ((0, 0), (0, r1p - r1))).astype(jnp.bfloat16)

    # stage 1: 1x1 conv + BN1 partial stats (Pallas)
    h1_raw, st1 = _conv_with_stats(x_cm, w1, t1)
    sc1, of1 = _fold_bn(st1, r1, g1, b1)

    # BN1-apply + ReLU + zero-pad + stride-2 dilated im2col: plain jnp so XLA
    # fuses the affine/ReLU into the gather glue (no extra HBM round trip).
    h1_act = jnp.maximum(h1_raw[:, :r1].astype(jnp.float32) * sc1 + of1, 0.0)
    h1_pad = jnp.pad(h1_act.reshape(cmid, n, h, w),
                     ((0, 0), (0, 0), (p, p), (p, p)))
    taps = []
    for ky in range(3):
        for kx in range(3):
            sl = h1_pad[:, :,
                        ky * d: ky * d + 2 * (ho - 1) + 1: 2,
                        kx * d: kx * d + 2 * (wo - 1) + 1: 2]
            taps.append(sl.reshape(cmid, r2))
    patches = jnp.concatenate(taps, axis=0)                   # (9*cmid, r2)
    patches = jnp.pad(patches, ((0, 0), (0, r2p - r2))).astype(jnp.bfloat16)

    # stage 2: dilated stride-2 3x3 conv as ONE K=9*cmid matmul + BN2 stats
    h2_raw, st2 = _conv_with_stats(patches, w2f, t2)
    sc2, of2 = _fold_bn(st2, r2, g2, b2)

    # stage 3: BN2-apply + ReLU fused with 1x1 conv3 matmul + BN3 stats
    h3_raw, st3 = _bn_relu_conv_with_stats(h2_raw, sc2, of2, w3, t2, r2)
    sc3, of3 = _fold_bn(st3, r2, g3, b3)

    # stage 4: BN3-apply + ReLU in jnp, fused by XLA with the final transpose.
    out_cm = jnp.maximum(h3_raw[:, :r2].astype(jnp.float32) * sc3 + of3, 0.0)
    out = out_cm.reshape(cout, n, ho, wo)
    return jnp.transpose(out, (1, 0, 2, 3))                   # back to NCHW


# ----------------------------- reference ------------------------------------ #

def _ref_forward(x, w1_oihw, w2_oihw, w3_oihw, g1, b1, g2, b2, g3, b3,
                 *, dilation, padding):
    dn = ('NCHW', 'OIHW', 'NCHW')
    hi = jax.lax.Precision.HIGHEST

    def bn(h, g, b):
        m = h.mean(axis=(0, 2, 3), keepdims=True)
        v = jnp.square(h - m).mean(axis=(0, 2, 3), keepdims=True)
        return ((h - m) * jax.lax.rsqrt(v + _EPS) * g.reshape(1, -1, 1, 1)
                + b.reshape(1, -1, 1, 1))

    h = jax.lax.conv_general_dilated(x, w1_oihw, (1, 1), 'VALID',
                                     dimension_numbers=dn, precision=hi)
    h = jax.nn.relu(bn(h, g1, b1))
    h = jax.lax.conv_general_dilated(h, w2_oihw, (2, 2),
                                     [(padding, padding), (padding, padding)],
                                     rhs_dilation=(dilation, dilation),
                                     dimension_numbers=dn, precision=hi)
    h = jax.nn.relu(bn(h, g2, b2))
    h = jax.lax.conv_general_dilated(h, w3_oihw, (1, 1), 'VALID',
                                     dimension_numbers=dn, precision=hi)
    h = jax.nn.relu(bn(h, g3, b3))
    return h


# ----------------------------- main ----------------------------------------- #

if __name__ == "__main__":
    inplanes, outplanes = 4, 8
    dilation, padding = 1, 1
    N, H, W = 2, 16, 16
    Cmid = outplanes // 2

    key = jax.random.PRNGKey(0)
    k_x, k1, k2, k3 = jax.random.split(key, 4)

    # deterministic parameter init (kaiming-ish scale, PyTorch-layout OIHW)
    w1_oihw = jax.random.normal(k1, (Cmid, inplanes, 1, 1), jnp.float32) \
        * np.sqrt(2.0 / inplanes)
    w2_oihw = jax.random.normal(k2, (Cmid, Cmid, 3, 3), jnp.float32) \
        * np.sqrt(2.0 / (Cmid * 9))
    w3_oihw = jax.random.normal(k3, (outplanes, Cmid, 1, 1), jnp.float32) \
        * np.sqrt(2.0 / Cmid)
    # BatchNorm affine params at PyTorch init values
    g1, b1 = jnp.ones((Cmid,), jnp.float32), jnp.zeros((Cmid,), jnp.float32)
    g2, b2 = jnp.ones((Cmid,), jnp.float32), jnp.zeros((Cmid,), jnp.float32)
    g3 = jnp.ones((outplanes,), jnp.float32)
    b3 = jnp.zeros((outplanes,), jnp.float32)

    # kernel-layout weights (bf16 MXU operands) derived from the OIHW tensors
    w1 = w1_oihw[:, :, 0, 0].astype(jnp.bfloat16)                   # (Cmid, Cin)
    w2f = jnp.transpose(w2_oihw, (0, 2, 3, 1)).reshape(
        Cmid, 9 * Cmid).astype(jnp.bfloat16)                        # (Cmid, 9*Cmid)
    w3 = w3_oihw[:, :, 0, 0].astype(jnp.bfloat16)                   # (Cout, Cmid)
    params = (w1, g1, b1, w2f, g2, b2, w3, g3, b3)

    x = jax.random.normal(k_x, (N, inplanes, H, W), jnp.float32)

    fwd = jax.jit(functools.partial(dilation_forward,
                                    dilation=dilation, padding=padding))
    out = jax.block_until_ready(fwd(x, params))

    ref = jax.block_until_ready(
        _ref_forward(x, w1_oihw, w2_oihw, w3_oihw, g1, b1, g2, b2, g3, b3,
                     dilation=dilation, padding=padding))

    assert out.shape == ref.shape, (out.shape, ref.shape)
    # Tolerance accounts for bf16 activation/weight streams (f32 accumulation).
    np.testing.assert_allclose(np.asarray(out), np.asarray(ref),
                               rtol=3e-2, atol=3e-2)
    print("KERNEL_OK")
</pallas_src>

<mosaic_0001>
module attributes {stable_mosaic.version = 11 : i64} {
  func.func @_conv_stats_kernel(%arg0: i32, %arg1: memref<4x256xbf16, #tpu.memory_space<vmem>>, %arg2: memref<4x4xbf16, #tpu.memory_space<vmem>>, %arg3: memref<4x256xbf16, #tpu.memory_space<vmem>>, %arg4: memref<1x8x128xf32, #tpu.memory_space<vmem>>) attributes {dimension_semantics = [#tpu.dimension_semantics<parallel>], iteration_bounds = array<i64: 2>, scalar_prefetch = 0 : i64, scratch_operands = 0 : i64, tpu.core_type = #tpu.core_type<tc>, window_params = [{transform_indices = @transform_0, window_bounds = array<i64: 4, 256>}, {pipeline_mode = #tpu.pipeline_mode<synchronous>, transform_indices = @transform_1, window_bounds = array<i64: 4, 4>}, {transform_indices = @transform_2, window_bounds = array<i64: 4, 256>}, {transform_indices = @transform_3, window_bounds = array<i64: 1, 8, 128>}]} {
    %c0 = arith.constant 0 : index
    %c0_0 = arith.constant 0 : index
    %0 = vector.load %arg2[%c0, %c0_0] : memref<4x4xbf16, #tpu.memory_space<vmem>>, vector<4x4xbf16>
    %c0_1 = arith.constant 0 : index
    %c0_2 = arith.constant 0 : index
    %1 = vector.load %arg1[%c0_1, %c0_2] : memref<4x256xbf16, #tpu.memory_space<vmem>>, vector<4x256xbf16>
    %cst = arith.constant dense<0.000000e+00> : vector<4x256xf32>
    %2 = tpu.matmul %0, %1, %cst {dimension_numbers = #tpu.dot_dimension_numbers<[1], [0], [0], [1], [0, 0, 1, 1], [], []>} : vector<4x4xbf16>, vector<4x256xbf16>, vector<4x256xf32> -> vector<4x256xf32>
    %3 = arith.truncf %2 : vector<4x256xf32> to vector<4x256xbf16>
    %c0_3 = arith.constant 0 : index
    %c0_4 = arith.constant 0 : index
    %4 = vector.load %arg3[%c0_3, %c0_4] : memref<4x256xbf16, #tpu.memory_space<vmem>>, vector<4x256xbf16>
    tpu.vector_store %arg3[%c0_3, %c0_4], %3 {strides = array<i32>} : memref<4x256xbf16, #tpu.memory_space<vmem>>, vector<4x256xbf16>,
    %cst_5 = arith.constant 0.000000e+00 : f32
    %5 = vector.broadcast %cst_5 : f32 to vector<4x128xf32>
    %cst_6 = arith.constant 0.000000e+00 : f32
    %6 = vector.broadcast %cst_6 : f32 to vector<4x128xf32>
    %7 = vector.extract_strided_slice %2 {offsets = [0, 0], sizes = [4, 128], strides = [1, 1]} : vector<4x256xf32> to vector<4x128xf32>
    %8 = arith.addf %5, %7 : vector<4x128xf32>
    %9 = arith.mulf %7, %7 : vector<4x128xf32>
    %10 = arith.addf %6, %9 : vector<4x128xf32>
    %11 = vector.extract_strided_slice %2 {offsets = [0, 128], sizes = [4, 128], strides = [1, 1]} : vector<4x256xf32> to vector<4x128xf32>
    %12 = arith.addf %8, %11 : vector<4x128xf32>
    %13 = arith.mulf %11, %11 : vector<4x128xf32>
    %14 = arith.addf %10, %13 : vector<4x128xf32>
    %c0_7 = arith.constant 0 : index
    %c0_8 = arith.constant 0 : index
    %c0_9 = arith.constant 0 : index
    %15 = vector.load %arg4[%c0_7, %c0_8, %c0_9] : memref<1x8x128xf32, #tpu.memory_space<vmem>>, vector<1x4x128xf32>
    %16 = vector.shape_cast %15 : vector<1x4x128xf32> to vector<4x128xf32>
    %17 = vector.shape_cast %12 : vector<4x128xf32> to vector<1x4x128xf32>
    tpu.vector_store %arg4[%c0_7, %c0_8, %c0_9], %17 {strides = array<i32>} : memref<1x8x128xf32, #tpu.memory_space<vmem>>, vector<1x4x128xf32>,
    %c0_10 = arith.constant 0 : index
    %c4 = arith.constant 4 : index
    %c0_11 = arith.constant 0 : index
    %18 = vector.load %arg4[%c0_10, %c4, %c0_11] : memref<1x8x128xf32, #tpu.memory_space<vmem>>, vector<1x4x128xf32>
    %19 = vector.shape_cast %18 : vector<1x4x128xf32> to vector<4x128xf32>
    %20 = vector.shape_cast %14 : vector<4x128xf32> to vector<1x4x128xf32>
    tpu.vector_store %arg4[%c0_10, %c4, %c0_11], %20 {strides = array<i32>} : memref<1x8x128xf32, #tpu.memory_space<vmem>>, vector<1x4x128xf32>,
    return
  }
  func.func @transform_0(%arg0: i32) -> (i32, i32) {
    %c0_i32 = arith.constant 0 : i32
    %c0_i32_0 = arith.constant 0 : i32
    return %c0_i32, %arg0 : i32, i32
  }
  func.func @transform_1(%arg0: i32) -> (i32, i32) {
    %c0_i32 = arith.constant 0 : i32
    %c0_i32_0 = arith.constant 0 : i32
    %c0_i32_1 = arith.constant 0 : i32
    return %c0_i32, %c0_i32_0 : i32, i32
  }
  func.func @transform_2(%arg0: i32) -> (i32, i32) {
    %c0_i32 = arith.constant 0 : i32
    %c0_i32_0 = arith.constant 0 : i32
    return %c0_i32, %arg0 : i32, i32
  }
  func.func @transform_3(%arg0: i32) -> (i32, i32, i32) {
    %c0_i32 = arith.constant 0 : i32
    %c0_i32_0 = arith.constant 0 : i32
    %c0_i32_1 = arith.constant 0 : i32
    return %arg0, %c0_i32, %c0_i32_0 : i32, i32, i32
  }
}

module attributes {stable_mosaic.version = 11 : i64} {
  func.func @_conv_stats_kernel(%arg0: i32, %arg1: memref<36x128xbf16, #tpu.memory_space<vmem>>, %arg2: memref<4x36xbf16, #tpu.memory_space<vmem>>, %arg3: memref<4x128xbf16, #tpu.memory_space<vmem>>, %arg4: memref<1x8x128xf32, #tpu.memory_space<vmem>>) attributes {dimension_semantics = [#tpu.dimension_semantics<parallel>], iteration_bounds = array<i64: 1>, scalar_prefetch = 0 : i64, scratch_operands = 0 : i64, tpu.core_type = #tpu.core_type<tc>, window_params = [{transform_indices = @transform_0, window_bounds = array<i64: 36, 128>}, {pipeline_mode = #tpu.pipeline_mode<synchronous>, transform_indices = @transform_1, window_bounds = array<i64: 4, 36>}, {transform_indices = @transform_2, window_bounds = array<i64: 4, 128>}, {transform_indices = @transform_3, window_bounds = array<i64: 1, 8, 128>}]} {
    %c0 = arith.constant 0 : index
    %c0_0 = arith.constant 0 : index
    %0 = vector.load %arg2[%c0, %c0_0] : memref<4x36xbf16, #tpu.memory_space<vmem>>, vector<4x36xbf16>
    %c0_1 = arith.constant 0 : index
    %c0_2 = arith.constant 0 : index
    %1 = vector.load %arg1[%c0_1, %c0_2] : memref<36x128xbf16, #tpu.memory_space<vmem>>, vector<36x128xbf16>
    %cst = arith.constant dense<0.000000e+00> : vector<4x128xf32>
    %2 = tpu.matmul %0, %1, %cst {dimension_numbers = #tpu.dot_dimension_numbers<[1], [0], [0], [1], [0, 0, 1, 1], [], []>} : vector<4x36xbf16>, vector<36x128xbf16>, vector<4x128xf32> -> vector<4x128xf32>
    %3 = arith.truncf %2 : vector<4x128xf32> to vector<4x128xbf16>
    %c0_3 = arith.constant 0 : index
    %c0_4 = arith.constant 0 : index
    %4 = vector.load %arg3[%c0_3, %c0_4] : memref<4x128xbf16, #tpu.memory_space<vmem>>, vector<4x128xbf16>
    tpu.vector_store %arg3[%c0_3, %c0_4], %3 {strides = array<i32>} : memref<4x128xbf16, #tpu.memory_space<vmem>>, vector<4x128xbf16>,
    %cst_5 = arith.constant 0.000000e+00 : f32
    %5 = vector.broadcast %cst_5 : f32 to vector<4x128xf32>
    %cst_6 = arith.constant 0.000000e+00 : f32
    %6 = vector.broadcast %cst_6 : f32 to vector<4x128xf32>
    %7 = arith.addf %5, %2 : vector<4x128xf32>
    %8 = arith.mulf %2, %2 : vector<4x128xf32>
    %9 = arith.addf %6, %8 : vector<4x128xf32>
    %c0_7 = arith.constant 0 : index
    %c0_8 = arith.constant 0 : index
    %c0_9 = arith.constant 0 : index
    %10 = vector.load %arg4[%c0_7, %c0_8, %c0_9] : memref<1x8x128xf32, #tpu.memory_space<vmem>>, vector<1x4x128xf32>
    %11 = vector.shape_cast %10 : vector<1x4x128xf32> to vector<4x128xf32>
    %12 = vector.shape_cast %7 : vector<4x128xf32> to vector<1x4x128xf32>
    tpu.vector_store %arg4[%c0_7, %c0_8, %c0_9], %12 {strides = array<i32>} : memref<1x8x128xf32, #tpu.memory_space<vmem>>, vector<1x4x128xf32>,
    %c0_10 = arith.constant 0 : index
    %c4 = arith.constant 4 : index
    %c0_11 = arith.constant 0 : index
    %13 = vector.load %arg4[%c0_10, %c4, %c0_11] : memref<1x8x128xf32, #tpu.memory_space<vmem>>, vector<1x4x128xf32>
    %14 = vector.shape_cast %13 : vector<1x4x128xf32> to vector<4x128xf32>
    %15 = vector.shape_cast %9 : vector<4x128xf32> to vector<1x4x128xf32>
    tpu.vector_store %arg4[%c0_10, %c4, %c0_11], %15 {strides = array<i32>} : memref<1x8x128xf32, #tpu.memory_space<vmem>>, vector<1x4x128xf32>,
    return
  }
  func.func @transform_0(%arg0: i32) -> (i32, i32) {
    %c0_i32 = arith.constant 0 : i32
    %c0_i32_0 = arith.constant 0 : i32
    return %c0_i32, %arg0 : i32, i32
  }
  func.func @transform_1(%arg0: i32) -> (i32, i32) {
    %c0_i32 = arith.constant 0 : i32
    %c0_i32_0 = arith.constant 0 : i32
    %c0_i32_1 = arith.constant 0 : i32
    return %c0_i32, %c0_i32_0 : i32, i32
  }
  func.func @transform_2(%arg0: i32) -> (i32, i32) {
    %c0_i32 = arith.constant 0 : i32
    %c0_i32_0 = arith.constant 0 : i32
    return %c0_i32, %arg0 : i32, i32
  }
  func.func @transform_3(%arg0: i32) -> (i32, i32, i32) {
    %c0_i32 = arith.constant 0 : i32
    %c0_i32_0 = arith.constant 0 : i32
    %c0_i32_1 = arith.constant 0 : i32
    return %arg0, %c0_i32, %c0_i32_0 : i32, i32, i32
  }
}

module attributes {stable_mosaic.version = 11 : i64} {
  func.func @_bn_relu_conv_stats_kernel(%arg0: i32, %arg1: memref<4x128xbf16, #tpu.memory_space<vmem>>, %arg2: memref<4x1xf32, #tpu.memory_space<vmem>>, %arg3: memref<4x1xf32, #tpu.memory_space<vmem>>, %arg4: memref<8x4xbf16, #tpu.memory_space<vmem>>, %arg5: memref<8x128xbf16, #tpu.memory_space<vmem>>, %arg6: memref<1x16x128xf32, #tpu.memory_space<vmem>>) attributes {dimension_semantics = [#tpu.dimension_semantics<parallel>], iteration_bounds = array<i64: 1>, scalar_prefetch = 0 : i64, scratch_operands = 0 : i64, tpu.core_type = #tpu.core_type<tc>, window_params = [{transform_indices = @transform_0, window_bounds = array<i64: 4, 128>}, {pipeline_mode = #tpu.pipeline_mode<synchronous>, transform_indices = @transform_1, window_bounds = array<i64: 4, 1>}, {pipeline_mode = #tpu.pipeline_mode<synchronous>, transform_indices = @transform_2, window_bounds = array<i64: 4, 1>}, {pipeline_mode = #tpu.pipeline_mode<synchronous>, transform_indices = @transform_3, window_bounds = array<i64: 8, 4>}, {transform_indices = @transform_4, window_bounds = array<i64: 8, 128>}, {transform_indices = @transform_5, window_bounds = array<i64: 1, 16, 128>}]} {
    %c0 = arith.constant 0 : index
    %c0_0 = arith.constant 0 : index
    %0 = vector.load %arg1[%c0, %c0_0] : memref<4x128xbf16, #tpu.memory_space<vmem>>, vector<4x128xbf16>
    %1 = arith.extf %0 : vector<4x128xbf16> to vector<4x128xf32>
    %c0_1 = arith.constant 0 : index
    %c0_2 = arith.constant 0 : index
    %2 = vector.load %arg2[%c0_1, %c0_2] : memref<4x1xf32, #tpu.memory_space<vmem>>, vector<4x1xf32>
    %3 = vector.broadcast %2 : vector<4x1xf32> to vector<4x128xf32>
    %4 = arith.mulf %1, %3 : vector<4x128xf32>
    %c0_3 = arith.constant 0 : index
    %c0_4 = arith.constant 0 : index
    %5 = vector.load %arg3[%c0_3, %c0_4] : memref<4x1xf32, #tpu.memory_space<vmem>>, vector<4x1xf32>
    %6 = vector.broadcast %5 : vector<4x1xf32> to vector<4x128xf32>
    %7 = arith.addf %4, %6 : vector<4x128xf32>
    %cst = arith.constant 0.000000e+00 : f32
    %8 = vector.broadcast %cst : f32 to vector<4x128xf32>
    %9 = arith.maximumf %7, %8 : vector<4x128xf32>
    %c0_5 = arith.constant 0 : index
    %c0_6 = arith.constant 0 : index
    %10 = vector.load %arg4[%c0_5, %c0_6] : memref<8x4xbf16, #tpu.memory_space<vmem>>, vector<8x4xbf16>
    %11 = arith.truncf %9 : vector<4x128xf32> to vector<4x128xbf16>
    %cst_7 = arith.constant dense<0.000000e+00> : vector<8x128xf32>
    %12 = tpu.matmul %10, %11, %cst_7 {dimension_numbers = #tpu.dot_dimension_numbers<[1], [0], [0], [1], [0, 0, 1, 1], [], []>} : vector<8x4xbf16>, vector<4x128xbf16>, vector<8x128xf32> -> vector<8x128xf32>
    %13 = arith.truncf %12 : vector<8x128xf32> to vector<8x128xbf16>
    %c0_8 = arith.constant 0 : index
    %c0_9 = arith.constant 0 : index
    %14 = vector.load %arg5[%c0_8, %c0_9] : memref<8x128xbf16, #tpu.memory_space<vmem>>, vector<8x128xbf16>
    tpu.vector_store %arg5[%c0_8, %c0_9], %13 {strides = array<i32>} : memref<8x128xbf16, #tpu.memory_space<vmem>>, vector<8x128xbf16>,
    %cst_10 = arith.constant 0.000000e+00 : f32
    %15 = vector.broadcast %cst_10 : f32 to vector<8x128xf32>
    %cst_11 = arith.constant 0.000000e+00 : f32
    %16 = vector.broadcast %cst_11 : f32 to vector<8x128xf32>
    %17 = arith.addf %15, %12 : vector<8x128xf32>
    %18 = arith.mulf %12, %12 : vector<8x128xf32>
    %19 = arith.addf %16, %18 : vector<8x128xf32>
    %c0_12 = arith.constant 0 : index
    %c0_13 = arith.constant 0 : index
    %c0_14 = arith.constant 0 : index
    %20 = vector.load %arg6[%c0_12, %c0_13, %c0_14] : memref<1x16x128xf32, #tpu.memory_space<vmem>>, vector<1x8x128xf32>
    %21 = vector.shape_cast %20 : vector<1x8x128xf32> to vector<8x128xf32>
    %22 = vector.shape_cast %17 : vector<8x128xf32> to vector<1x8x128xf32>
    tpu.vector_store %arg6[%c0_12, %c0_13, %c0_14], %22 {strides = array<i32>} : memref<1x16x128xf32, #tpu.memory_space<vmem>>, vector<1x8x128xf32>,
    %c0_15 = arith.constant 0 : index
    %c8 = arith.constant 8 : index
    %c0_16 = arith.constant 0 : index
    %23 = vector.load %arg6[%c0_15, %c8, %c0_16] : memref<1x16x128xf32, #tpu.memory_space<vmem>>, vector<1x8x128xf32>
    %24 = vector.shape_cast %23 : vector<1x8x128xf32> to vector<8x128xf32>
    %25 = vector.shape_cast %19 : vector<8x128xf32> to vector<1x8x128xf32>
    tpu.vector_store %arg6[%c0_15, %c8, %c0_16], %25 {strides = array<i32>} : memref<1x16x128xf32, #tpu.memory_space<vmem>>, vector<1x8x128xf32>,
    return
  }
  func.func @transform_0(%arg0: i32) -> (i32, i32) {
    %c0_i32 = arith.constant 0 : i32
    %c0_i32_0 = arith.constant 0 : i32
    return %c0_i32, %arg0 : i32, i32
  }
  func.func @transform_1(%arg0: i32) -> (i32, i32) {
    %c0_i32 = arith.constant 0 : i32
    %c0_i32_0 = arith.constant 0 : i32
    %c0_i32_1 = arith.constant 0 : i32
    return %c0_i32, %c0_i32_0 : i32, i32
  }
  func.func @transform_2(%arg0: i32) -> (i32, i32) {
    %c0_i32 = arith.constant 0 : i32
    %c0_i32_0 = arith.constant 0 : i32
    %c0_i32_1 = arith.constant 0 : i32
    return %c0_i32, %c0_i32_0 : i32, i32
  }
  func.func @transform_3(%arg0: i32) -> (i32, i32) {
    %c0_i32 = arith.constant 0 : i32
    %c0_i32_0 = arith.constant 0 : i32
    %c0_i32_1 = arith.constant 0 : i32
    return %c0_i32, %c0_i32_0 : i32, i32
  }
  func.func @transform_4(%arg0: i32) -> (i32, i32) {
    %c0_i32 = arith.constant 0 : i32
    %c0_i32_0 = arith.constant 0 : i32
    return %c0_i32, %arg0 : i32, i32
  }
  func.func @transform_5(%arg0: i32) -> (i32, i32, i32) {
    %c0_i32 = arith.constant 0 : i32
    %c0_i32_0 = arith.constant 0 : i32
    %c0_i32_1 = arith.constant 0 : i32
    return %arg0, %c0_i32, %c0_i32_0 : i32, i32, i32
  }
}

</mosaic_0001>

<llo_original>
// kernel: dilation_forward.3
$region0: #{dilation_forward.3}
  #allocation0 [shape = 'u32[]', space=smem, size = 0x4, offset = 0x4, fixed_abs, tag = 'smem constant byte address 0x4 - core index']
  #allocation1 [shape = 'u32[144,128]{1,0:T(1,128)}', space=vmem, size = 0x12000, scoped, tag = 'internal scratch']
  %s0 = inlined_call_operand.vmem [shape: bf16[4,512], index: 0, kind: input, shape index: {}]
  %s1 = inlined_call_operand.vmem [shape: bf16[4,4], index: 1, kind: input, shape index: {}]
  %s2 = inlined_call_operand.vmem [shape: bf16[4,512], index: 2, kind: output, shape index: {0}]
  %s3 = inlined_call_operand.vmem [shape: f32[2,8,128], index: 3, kind: output, shape index: {1}]
  %4 = xla_tuple %s2, %s3
  %s5 = sld [smem:[#allocation0]]
  $region49: #{dilation_forward.3} parent=0
    _
  %s7 = ssub.s32 1, %s5
  %s8 = scalar_select 0, %s7, %s5
  loop: start=0, step=1, limit=4
  $region2: #{dilation_forward.3} parent=0 // loop_pre_header
    _
  $region3: #{dilation_forward.3} parent=0 // loop_header
    %s10 = sphi 0, %s14
    %p11 = scmp.ge.s32.totalorder %s10, 4
    %s20 = sphi 0, %s22
    %s23 = sphi 0, %s20
    %s24 = sphi 0, %s23
    %s40 = sphi 0, %s24
    %s44 = sphi 0, %s44
    %s46 = sphi 0, %s44
    %s47 = sphi 0, %s46
    %s61 = sphi 0, %s47
    %s67 = sphi 0, %s69
    %s70 = sphi 0, %s67
    %s71 = sphi 0, %s70
    %s87 = sphi 0, %s71
    %s93 = sphi 0, %s95
    %s96 = sphi 0, %s93
    %s97 = sphi 0, %s96
    %s113 = sphi 0, %s97
  $region4: #{dilation_forward.3} parent=0 // loop_header_branch
    %13 = sbr.rel (%p11) target = $region8
  $region5: #{dilation_forward.3} parent=0 // loop_body
    %s15 = ssub.s32 %s10, 1
    %s16 = ssub.s32 %s10, 2
    %s17 = sadd.s32 %s10, 1
    %s18 = ssub.s32 %s10, %s17
    %p19 = scmp.eq.s32.totalorder %s18, 0
    %s21 = sadd.s32 %s20, 1
    %s22 = scalar_select %p19, %s20, %s21
    %p25 = pneg %p19
    %p26 = scmp.eq.s32.totalorder %s10, 1
    %p27 = por %p25, %p26
    %p28 = scmp.ne.s32.totalorder %s20, %s23
    %p29 = scmp.eq.s32.totalorder %s10, 0
    %p30 = por %p28, %p29
    %p31 = scmp.ne.s32.totalorder %s20, %s23
    %p32 = scmp.eq.s32.totalorder %s15, 1
    %p33 = por %p31, %p32
    %p34 = scmp.ne.s32.totalorder %s23, %s24
    %p35 = scmp.eq.s32.totalorder %s15, 0
    %p36 = por %p34, %p35
    %p37 = scmp.ne.s32.totalorder %s23, %s24
    %p38 = scmp.eq.s32.totalorder %s16, 1
    %p39 = por %p37, %p38
    %p41 = scmp.ne.s32.totalorder %s24, %s40
    %p42 = scmp.eq.s32.totalorder %s16, 0
    %p43 = por %p41, %p42
    %s45 = sadd.s32 %s44, 1
    %p48 = scmp.eq.s32.totalorder %s10, 1
    %p49 = scmp.ne.s32.totalorder %s44, %s46
    %p50 = scmp.eq.s32.totalorder %s10, 0
    %p51 = por %p49, %p50
    %p52 = scmp.ne.s32.totalorder %s44, %s46
    %p53 = scmp.eq.s32.totalorder %s15, 1
    %p54 = por %p52, %p53
    %p55 = scmp.ne.s32.totalorder %s46, %s47
    %p56 = scmp.eq.s32.totalorder %s15, 0
    %p57 = por %p55, %p56
    %p58 = scmp.ne.s32.totalorder %s46, %s47
    %p59 = scmp.eq.s32.totalorder %s16, 1
    %p60 = por %p58, %p59
    %p62 = scmp.ne.s32.totalorder %s47, %s61
    %p63 = scmp.eq.s32.totalorder %s16, 0
    %p64 = por %p62, %p63
    %s65 = ssub.s32 %s10, %s17
    %p66 = scmp.eq.s32.totalorder %s65, 0
    %s68 = sadd.s32 %s67, 1
    %s69 = scalar_select %p66, %s67, %s68
    %p72 = pneg %p66
    %p73 = scmp.eq.s32.totalorder %s10, 1
    %p74 = por %p72, %p73
    %p75 = scmp.ne.s32.totalorder %s67, %s70
    %p76 = scmp.eq.s32.totalorder %s10, 0
    %p77 = por %p75, %p76
    %p78 = scmp.ne.s32.totalorder %s67, %s70
    %p79 = scmp.eq.s32.totalorder %s15, 1
    %p80 = por %p78, %p79
    %p81 = scmp.ne.s32.totalorder %s70, %s71
    %p82 = scmp.eq.s32.totalorder %s15, 0
    %p83 = por %p81, %p82
    %p84 = scmp.ne.s32.totalorder %s70, %s71
    %p85 = scmp.eq.s32.totalorder %s16, 1
    %p86 = por %p84, %p85
    %p88 = scmp.ne.s32.totalorder %s71, %s87
    %p89 = scmp.eq.s32.totalorder %s16, 0
    %p90 = por %p88, %p89
    %s91 = ssub.s32 %s10, %s17
    %p92 = scmp.eq.s32.totalorder %s91, 0
    %s94 = sadd.s32 %s93, 1
    %s95 = scalar_select %p92, %s93, %s94
    %p98 = pneg %p92
    %p99 = scmp.eq.s32.totalorder %s10, 1
    %p100 = por %p98, %p99
    %p101 = scmp.ne.s32.totalorder %s93, %s96
    %p102 = scmp.eq.s32.totalorder %s10, 0
    %p103 = por %p101, %p102
    %p104 = scmp.ne.s32.totalorder %s93, %s96
    %p105 = scmp.eq.s32.totalorder %s15, 1
    %p106 = por %p104, %p105
    %p107 = scmp.ne.s32.totalorder %s96, %s97
    %p108 = scmp.eq.s32.totalorder %s15, 0
    %p109 = por %p107, %p108
    %p110 = scmp.ne.s32.totalorder %s96, %s97
    %p111 = scmp.eq.s32.totalorder %s16, 1
    %p112 = por %p110, %p111
    %p114 = scmp.ne.s32.totalorder %s97, %s113
    %p115 = scmp.eq.s32.totalorder %s16, 0
    %p116 = por %p114, %p115
    %p117 = scmp.le.s32.totalorder 1, %s10
    %p118 = scmp.lt.s32.totalorder %s10, 3
    %p119 = pnand %p117, %p118
    %p120 = pneg %p119
    // Predicated region
    $region9: #{dilation_forward.3} parent=5 // pred_check
      _
    $region10: #{dilation_forward.3} parent=5 // pred_check_branch
      %122 = sbr.rel (%p119) target = $region12
    $region11: #{dilation_forward.3} parent=5 // pred_region
      %s123 = ssub.s32 %s10, 1
      // Predicated region
      $region13: #{dilation_forward.3} parent=11 // pred_check
        %p124 = pneg %p57
      $region14: #{dilation_forward.3} parent=11 // pred_check_branch
        %126 = sbr.rel (%p124) target = $region16
      $region15: #{dilation_forward.3} parent=11 // pred_region
        _
      $region16: #{dilation_forward.3} parent=11 // pred_fallthru
        _
    $region12: #{dilation_forward.3} parent=5 // pred_fallthru
      _
    %p127 = scmp.lt.s32.totalorder %s10, 2
    // Predicated region
    $region17: #{dilation_forward.3} parent=5 // pred_check
      %p128 = pneg %p127
    $region18: #{dilation_forward.3} parent=5 // pred_check_branch
      %130 = sbr.rel (%p128) target = $region20
    $region19: #{dilation_forward.3} parent=5 // pred_region
      // Predicated region
      $region21: #{dilation_forward.3} parent=19 // pred_check
        %p131 = pneg %p30
      $region22: #{dilation_forward.3} parent=19 // pred_check_branch
        %133 = sbr.rel (%p131) target = $region24
      $region23: #{dilation_forward.3} parent=19 // pred_region
        %s134 = smul.u32 2, %s10
        %p135 = scmp.lt.s32.totalorder %s134, 3
        %s136 = scalar_select %p135, %s134, 3
        %s137 = smul.addr %s136, 2
        %s138 = scalar_lea.vmem %s0, %s137
        %s139 = smul.u32 2, %s10
      $region24: #{dilation_forward.3} parent=19 // pred_fallthru
        _
    $region20: #{dilation_forward.3} parent=5 // pred_fallthru
      _
    %p140 = scmp.le.s32.totalorder 1, %s10
    %p141 = scmp.lt.s32.totalorder %s10, 3
    %p142 = pnand %p140, %p141
    %p143 = pneg %p142
    // Predicated region
    $region25: #{dilation_forward.3} parent=5 // pred_check
      _
    $region26: #{dilation_forward.3} parent=5 // pred_check_branch
      %145 = sbr.rel (%p142) target = $region28
    $region27: #{dilation_forward.3} parent=5 // pred_region
      %s146 = ssub.s32 %s10, 1
      %s147 = smul.u32 2, %s15
      %p148 = scmp.lt.s32.totalorder %s147, 3
      %s149 = scalar_select %p148, %s147, 3
      %s150 = smul.addr %s149, 2
      %s151 = scalar_lea.vmem %s0, %s150
      %p152 = pneg %p36
      %p153 = pneg %p33
      %p154 = pneg %p57
      %p155 = pneg %p54
      %p156 = pneg %p83
      %p157 = pneg %p80
      %s158 = smul.u32 2, %s15
      %p159 = scmp.lt.s32.totalorder %s158, 3
      %s160 = scalar_select %p159, %s158, 3
      %s161 = smul.addr %s160, 2
      %s162 = scalar_lea.vmem %s2, %s161
      %p163 = pneg %p109
      %p164 = pneg %p106
      %p165 = scmp.lt.s32.totalorder %s15, 1
      %s166 = scalar_select %p165, %s15, 1
      %s167 = smul.addr %s166, 8
      %s168 = scalar_lea.vmem %s3, %s167
      %s169 = smul.u32 2, %s15
      %p170 = scmp.lt.s32.totalorder %s169, 3
      %s171 = scalar_select %p170, %s169, 3
      %s172 = smul.addr %s171, 2
      %s173 = scalar_lea.vmem %s0, %s172
      %s174 = smul.u32 2, %s15
      %s175 = smul.u32 2, %s15
      %p176 = scmp.lt.s32.totalorder %s175, 3
      %s177 = scalar_select %p176, %s175, 3
      %s178 = smul.addr %s177, 2
      %s179 = scalar_lea.vmem %s2, %s178
      %s180 = smul.u32 2, %s15
      %p181 = scmp.lt.s32.totalorder %s15, 1
      %s182 = scalar_select %p181, %s15, 1
      %s183 = smul.addr %s182, 8
      %s184 = scalar_lea.vmem %s3, %s183
      %v186 = vld [vmem:[%s1] sm:$0x3]
      %v187 = vld [vmem:[%s173] sm:$0xf]
      %v190 = vunpack.c.l.s4 1983009808
      %v191 = vunpack.c.0.s8 %v190
      %v192 = vlaneseq
      %v193 = vshrl.u32 %v192, 7
      %v194 = vsub.s32 %v191, %v193
      %v195 = vrot.slane %v187, %v194
      %v196 = vcombine.high %v195, %v195
      %vm197 = vcmask 31744
      %v199 = vsel %vm197, %v186, 0
      %vm201 = vcmask 1041408
      %v203 = vsel %vm201, %v195, 0
      %v206 = vsel %vm201, %v196, 0
      %208 = vmatprep.subr.bf16.mxu0 %v206
      %209 = vmatpush1.bf16.msra.mxu0 %v203
      %210 = vmatprep.subr.bf16.mxu0 0
      %211 = vmatpush1.bf16.msra.mxu0 0
      %212 = vmatprep.subr.bf16.mxu0 0
      %213 = vmatpush1.bf16.msra.mxu0 0
      %214 = vmatprep.subr.bf16.mxu0 0
      %215 = vmatpush1.bf16.msra.mxu0 0
      %216 = vmatprep.subr.bf16.mxu0 0
      %217 = vmatpush1.bf16.msra.mxu0 0
      %218 = vmatprep.subr.bf16.mxu0 0
      %219 = vmatpush1.bf16.msra.mxu0 0
      %220 = vmatprep.subr.bf16.mxu0 0
      %221 = vmatpush1.bf16.msra.mxu0 0
      %222 = vmatprep.subr.bf16.mxu0 0
      %223 = vmatpush1.bf16.msra.mxu0 0
      %224 = vmatprep.subr.bf16.mxu0 0
      %225 = vmatpush1.bf16.msra.mxu0 0
      %226 = vmatprep.subr.bf16.mxu0 0
      %227 = vmatpush1.bf16.msra.mxu0 0
      %228 = vmatprep.subr.bf16.mxu0 0
      %229 = vmatpush1.bf16.msra.mxu0 0
      %230 = vmatprep.subr.bf16.mxu0 0
      %231 = vmatpush1.bf16.msra.mxu0 0
      %232 = vmatprep.subr.bf16.mxu0 0
      %233 = vmatpush1.bf16.msra.mxu0 0
      %234 = vmatprep.subr.bf16.mxu0 0
      %235 = vmatpush1.bf16.msra.mxu0 0
      %236 = vmatprep.subr.bf16.mxu0 0
      %237 = vmatpush1.bf16.msra.mxu0 0
      %238 = vmatprep.subr.bf16.mxu0 0
      %239 = vmatpush1.bf16.msra.mxu0 0
      %240 = vmatprep.mubr.bf16.mxu0 0
      %241 = vmatmul.mubr.bf16.gmra.mrb[0].mxu0 %v199
      %v242 = vpop.f32.mrb[0].mxu0
      %v243 = vadd.f32 0.0, %v242
      %v244 = vpop.f32.mrb[0].mxu0
      %v245 = vadd.f32 0.0, %v244
      %v246 = vpop.f32.mrb[0].mxu0
      %v247 = vpop.f32.mrb[0].mxu0
      %248 = vdwg.mxu0
      %v249 = vpack.c.bf16 %v243, %v243
      %v250 = vpack.c.bf16 %v245, %v245
      %v253 = vcombine.low %v249, %v250
      %v255 = vunpack.c.l.s4 1983009808
      %v256 = vunpack.c.0.s8 %v255
      %v257 = vlaneseq
      %v258 = vshrl.u32 %v257, 7
      %v259 = vsub.s32 %v256, %v258
      %v260 = vrot.slane %v253, %v259
      %262 = vst [vmem:[%s179] sm:$0xf] %v260
      %v263 = vadd.f32 %v243, 0.0
      %v264 = vmul.f32 %v243, %v243
      %v265 = vadd.f32 %v264, 0.0
      %v266 = vadd.f32 %v263, %v245
      %v267 = vmul.f32 %v245, %v245
      %v268 = vadd.f32 %v265, %v267
      %269 = vst [vmem:[%s184] sm:$0xf] %v266
      %270 = vst [vmem:[%s184 + $0x4] sm:$0xf] %v268
      %s271 = smul.u32 2, %s15
      %p272 = scmp.lt.s32.totalorder %s271, 3
      %s273 = scalar_select %p272, %s271, 3
      %s274 = smul.addr %s273, 2
      %s275 = scalar_lea.vmem %s2, %s274
      %p276 = scmp.lt.s32.totalorder %s15, 1
      %s277 = scalar_select %p276, %s15, 1
      %s278 = smul.addr %s277, 8
      %s279 = scalar_lea.vmem %s3, %s278
      // Predicated region
      $region29: #{dilation_forward.3} parent=27 // pred_check
        %p280 = pneg %p80
      $region30: #{dilation_forward.3} parent=27 // pred_check_branch
        %282 = sbr.rel (%p280) target = $region32
      $region31: #{dilation_forward.3} parent=27 // pred_region
        %s283 = smul.u32 2, %s15
      $region32: #{dilation_forward.3} parent=27 // pred_fallthru
        _
      // Predicated region
      $region33: #{dilation_forward.3} parent=27 // pred_check
        %p284 = pneg %p106
      $region34: #{dilation_forward.3} parent=27 // pred_check_branch
        %286 = sbr.rel (%p284) target = $region36
      $region35: #{dilation_forward.3} parent=27 // pred_region
        _
      $region36: #{dilation_forward.3} parent=27 // pred_fallthru
        _
    $region28: #{dilation_forward.3} parent=5 // pred_fallthru
      _
    %p287 = scmp.le.s32.totalorder 2, %s10
    // Predicated region
    $region37: #{dilation_forward.3} parent=5 // pred_check
      %p288 = pneg %p287
    $region38: #{dilation_forward.3} parent=5 // pred_check_branch
      %290 = sbr.rel (%p288) target = $region40
    $region39: #{dilation_forward.3} parent=5 // pred_region
      %s291 = ssub.s32 %s10, 2
      // Predicated region
      $region41: #{dilation_forward.3} parent=39 // pred_check
        %p292 = pneg %p86
      $region42: #{dilation_forward.3} parent=39 // pred_check_branch
        %294 = sbr.rel (%p292) target = $region44
      $region43: #{dilation_forward.3} parent=39 // pred_region
        %s295 = smul.u32 2, %s16
        %p296 = scmp.lt.s32.totalorder %s295, 3
        %s297 = scalar_select %p296, %s295, 3
        %s298 = smul.addr %s297, 2
        %s299 = scalar_lea.vmem %s2, %s298
      $region44: #{dilation_forward.3} parent=39 // pred_fallthru
        _
      // Predicated region
      $region45: #{dilation_forward.3} parent=39 // pred_check
        %p300 = pneg %p112
      $region46: #{dilation_forward.3} parent=39 // pred_check_branch
        %302 = sbr.rel (%p300) target = $region48
      $region47: #{dilation_forward.3} parent=39 // pred_region
        %p303 = scmp.lt.s32.totalorder %s16, 1
        %s304 = scalar_select %p303, %s16, 1
        %s305 = smul.addr %s304, 8
        %s306 = scalar_lea.vmem %s3, %s305
      $region48: #{dilation_forward.3} parent=39 // pred_fallthru
        _
    $region40: #{dilation_forward.3} parent=5 // pred_fallthru
      _
  $region6: #{dilation_forward.3} parent=0 // loop_footer
    %s14 = sadd.s32 1, %s10
  $region7: #{dilation_forward.3} parent=0 // loop_footer_branch
    %9 = sbr.rel target = $region3
  $region8: #{dilation_forward.3} parent=0 // loop_exit
    _

// kernel: dilation_forward.4
$region0: #{dilation_forward.4}
  #allocation0 [shape = 'u32[]', space=smem, size = 0x4, offset = 0x4, fixed_abs, tag = 'smem constant byte address 0x4 - core index']
  #allocation1 [shape = 'u32[144,128]{1,0:T(1,128)}', space=vmem, size = 0x12000, scoped, tag = 'internal scratch']
  %s0 = inlined_call_operand.vmem [shape: bf16[36,128], index: 0, kind: input, shape index: {}]
  %s1 = inlined_call_operand.vmem [shape: bf16[4,36], index: 1, kind: input, shape index: {}]
  %s2 = inlined_call_operand.vmem [shape: bf16[4,128], index: 2, kind: output, shape index: {0}]
  %s3 = inlined_call_operand.vmem [shape: f32[1,8,128], index: 3, kind: output, shape index: {1}]
  %4 = xla_tuple %s2, %s3
  %s5 = sld [smem:[#allocation0]]
  $region26: #{dilation_forward.4} parent=0
    _
  %s7 = ssub.s32 1, %s5
  %s8 = scalar_select 0, %s7, %s5
  // Predicated region
  $region2: #{dilation_forward.4} parent=0 // pred_check
    _
  $region3: #{dilation_forward.4} parent=0 // pred_check_branch
    %10 = sbr.rel (0) target = $region5
  $region4: #{dilation_forward.4} parent=0 // pred_region
    _
  $region5: #{dilation_forward.4} parent=0 // pred_fallthru
    _
  // Predicated region
  $region6: #{dilation_forward.4} parent=0 // pred_check
    _
  $region7: #{dilation_forward.4} parent=0 // pred_check_branch
    %12 = sbr.rel (0) target = $region9
  $region8: #{dilation_forward.4} parent=0 // pred_region
    _
  $region9: #{dilation_forward.4} parent=0 // pred_fallthru
    _
  %v14 = vld [vmem:[%s1] sm:$0x3]
  %v15 = vld [vmem:[%s0] sm:$0xf]
  %v16 = vld [vmem:[%s0 + $0x4] sm:$0xf]
  %v17 = vld [vmem:[%s0 + $0x8] sm:$0xf]
  %v18 = vld [vmem:[%s0 + $0xc] sm:$0xf]
  %v19 = vld [vmem:[%s0 + $0x10] sm:$0x3]
  %v25 = vunpack.c.l.b16 %v15
  %v26 = vunpack.c.l.b16 %v16
  %v27 = vunpack.c.l.b16 %v17
  %v28 = vunpack.c.l.b16 %v18
  %v29 = vunpack.c.l.b16 %v19
  %v30 = vpack.c.b16 %v26, %v25
  %v31 = vpack.c.b16 %v28, %v27
  %v32 = vpack.c.b16 %v29, %v29
  %vm35 = vcmask 293888
  %v37 = vsel %vm35, %v14, 0
  %vm39 = vcmask 1041408
  %v41 = vsel %vm39, %v32, 0
  %43 = vmatprep.subr.bf16.mxu0 0
  %44 = vmatpush1.bf16.msra.mxu0 %v30
  %45 = vmatprep.subr.bf16.mxu0 0
  %46 = vmatpush1.bf16.msra.mxu0 %v31
  %47 = vmatprep.subr.bf16.mxu0 0
  %48 = vmatpush1.bf16.msra.mxu0 %v41
  %49 = vmatprep.subr.bf16.mxu0 0
  %50 = vmatpush1.bf16.msra.mxu0 0
  %51 = vmatprep.subr.bf16.mxu0 0
  %52 = vmatpush1.bf16.msra.mxu0 0
  %53 = vmatprep.subr.bf16.mxu0 0
  %54 = vmatpush1.bf16.msra.mxu0 0
  %55 = vmatprep.subr.bf16.mxu0 0
  %56 = vmatpush1.bf16.msra.mxu0 0
  %57 = vmatprep.subr.bf16.mxu0 0
  %58 = vmatpush1.bf16.msra.mxu0 0
  %59 = vmatprep.subr.bf16.mxu0 0
  %60 = vmatpush1.bf16.msra.mxu0 0
  %61 = vmatprep.subr.bf16.mxu0 0
  %62 = vmatpush1.bf16.msra.mxu0 0
  %63 = vmatprep.subr.bf16.mxu0 0
  %64 = vmatpush1.bf16.msra.mxu0 0
  %65 = vmatprep.subr.bf16.mxu0 0
  %66 = vmatpush1.bf16.msra.mxu0 0
  %67 = vmatprep.subr.bf16.mxu0 0
  %68 = vmatpush1.bf16.msra.mxu0 0
  %69 = vmatprep.subr.bf16.mxu0 0
  %70 = vmatpush1.bf16.msra.mxu0 0
  %71 = vmatprep.subr.bf16.mxu0 0
  %72 = vmatpush1.bf16.msra.mxu0 0
  %73 = vmatprep.subr.bf16.mxu0 0
  %74 = vmatpush1.bf16.msra.mxu0 0
  %75 = vmatprep.mubr.bf16.mxu0 0
  %76 = vmatmul.mubr.bf16.gmra.mrb[0].mxu0 %v37
  %v77 = vpop.f32.mrb[0].mxu0
  %v78 = vadd.f32 0.0, %v77
  %v79 = vpop.f32.mrb[0].mxu0
  %v80 = vpop.f32.mrb[0].mxu0
  %v81 = vpop.f32.mrb[0].mxu0
  %82 = vdwg.mxu0
  %v83 = vpack.c.bf16 %v78, %v78
  %84 = vst [vmem:[%s2] sm:$0x3] %v83
  %v85 = vadd.f32 %v78, 0.0
  %v86 = vmul.f32 %v78, %v78
  %v87 = vadd.f32 %v86, 0.0
  %88 = vst [vmem:[%s3] sm:$0xf] %v85
  %89 = vst [vmem:[%s3 + $0x4] sm:$0xf] %v87
  // Predicated region
  $region10: #{dilation_forward.4} parent=0 // pred_check
    _
  $region11: #{dilation_forward.4} parent=0 // pred_check_branch
    %91 = sbr.rel (0) target = $region13
  $region12: #{dilation_forward.4} parent=0 // pred_region
    _
  $region13: #{dilation_forward.4} parent=0 // pred_fallthru
    _
  // Predicated region
  $region14: #{dilation_forward.4} parent=0 // pred_check
    _
  $region15: #{dilation_forward.4} parent=0 // pred_check_branch
    %93 = sbr.rel (0) target = $region17
  $region16: #{dilation_forward.4} parent=0 // pred_region
    _
  $region17: #{dilation_forward.4} parent=0 // pred_fallthru
    _
  // Predicated region
  $region18: #{dilation_forward.4} parent=0 // pred_check
    _
  $region19: #{dilation_forward.4} parent=0 // pred_check_branch
    %95 = sbr.rel (0) target = $region21
  $region20: #{dilation_forward.4} parent=0 // pred_region
    _
  $region21: #{dilation_forward.4} parent=0 // pred_fallthru
    _
  // Predicated region
  $region22: #{dilation_forward.4} parent=0 // pred_check
    _
  $region23: #{dilation_forward.4} parent=0 // pred_check_branch
    %97 = sbr.rel (0) target = $region25
  $region24: #{dilation_forward.4} parent=0 // pred_region
    _
  $region25: #{dilation_forward.4} parent=0 // pred_fallthru
    _

// kernel: dilation_forward.5
$region0: #{dilation_forward.5}
  #allocation0 [shape = 'u32[]', space=smem, size = 0x4, offset = 0x4, fixed_abs, tag = 'smem constant byte address 0x4 - core index']
  #allocation1 [shape = 'u32[144,128]{1,0:T(1,128)}', space=vmem, size = 0x12000, scoped, tag = 'internal scratch']
  %s0 = inlined_call_operand.vmem [shape: bf16[4,128], index: 0, kind: input, shape index: {}]
  %s1 = inlined_call_operand.vmem [shape: f32[4,1], index: 1, kind: input, shape index: {}]
  %s2 = inlined_call_operand.vmem [shape: f32[4,1], index: 2, kind: input, shape index: {}]
  %s3 = inlined_call_operand.vmem [shape: bf16[8,4], index: 3, kind: input, shape index: {}]
  %s4 = inlined_call_operand.vmem [shape: bf16[8,128], index: 4, kind: output, shape index: {0}]
  %s5 = inlined_call_operand.vmem [shape: f32[1,16,128], index: 5, kind: output, shape index: {1}]
  %6 = xla_tuple %s4, %s5
  %s7 = sld [smem:[#allocation0]]
  $region34: #{dilation_forward.5} parent=0
    _
  %s9 = ssub.s32 1, %s7
  %s10 = scalar_select 0, %s9, %s7
  // Predicated region
  $region2: #{dilation_forward.5} parent=0 // pred_check
    _
  $region3: #{dilation_forward.5} parent=0 // pred_check_branch
    %12 = sbr.rel (0) target = $region5
  $region4: #{dilation_forward.5} parent=0 // pred_region
    _
  $region5: #{dilation_forward.5} parent=0 // pred_fallthru
    _
  // Predicated region
  $region6: #{dilation_forward.5} parent=0 // pred_check
    _
  $region7: #{dilation_forward.5} parent=0 // pred_check_branch
    %14 = sbr.rel (0) target = $region9
  $region8: #{dilation_forward.5} parent=0 // pred_region
    _
  $region9: #{dilation_forward.5} parent=0 // pred_fallthru
    _
  // Predicated region
  $region10: #{dilation_forward.5} parent=0 // pred_check
    _
  $region11: #{dilation_forward.5} parent=0 // pred_check_branch
    %16 = sbr.rel (0) target = $region13
  $region12: #{dilation_forward.5} parent=0 // pred_region
    _
  $region13: #{dilation_forward.5} parent=0 // pred_fallthru
    _
  // Predicated region
  $region14: #{dilation_forward.5} parent=0 // pred_check
    _
  $region15: #{dilation_forward.5} parent=0 // pred_check_branch
    %18 = sbr.rel (0) target = $region17
  $region16: #{dilation_forward.5} parent=0 // pred_region
    _
  $region17: #{dilation_forward.5} parent=0 // pred_fallthru
    _
  %v20 = vld [vmem:[%s0] sm:$0x3]
  %v21 = vunpack.c.l.bf16 %v20
  %v22 = vld [vmem:[%s1] sm:$0xf]
  %24 = vset.pattern.permute.xlu0 0
  %25 = vperm.xlu0 %24, %v22
  %v26 = vpop.permute.xlu0 %25
  %v28 = vmul.f32 %v21, %v26
  %v29 = vld [vmem:[%s2] sm:$0xf]
  %31 = vset.pattern.permute.xlu0 0
  %32 = vperm.xlu0 %31, %v29
  %v33 = vpop.permute.xlu0 %32
  %v35 = vadd.f32 %v28, %v33
  %v36 = vmax.f32 %v35, 0.0
  %v37 = vld [vmem:[%s3] sm:$0xf]
  %v38 = vpack.c.bf16 %v36, %v36
  %vm39 = vcmask 31744
  %v41 = vsel %vm39, %v37, 0
  %vm43 = vcmask 1041408
  %v45 = vsel %vm43, %v38, 0
  %47 = vmatprep.subr.bf16.mxu0 0
  %48 = vmatpush1.bf16.msra.mxu0 %v45
  %49 = vmatprep.subr.bf16.mxu0 0
  %50 = vmatpush1.bf16.msra.mxu0 0
  %51 = vmatprep.subr.bf16.mxu0 0
  %52 = vmatpush1.bf16.msra.mxu0 0
  %53 = vmatprep.subr.bf16.mxu0 0
  %54 = vmatpush1.bf16.msra.mxu0 0
  %55 = vmatprep.subr.bf16.mxu0 0
  %56 = vmatpush1.bf16.msra.mxu0 0
  %57 = vmatprep.subr.bf16.mxu0 0
  %58 = vmatpush1.bf16.msra.mxu0 0
  %59 = vmatprep.subr.bf16.mxu0 0
  %60 = vmatpush1.bf16.msra.mxu0 0
  %61 = vmatprep.subr.bf16.mxu0 0
  %62 = vmatpush1.bf16.msra.mxu0 0
  %63 = vmatprep.subr.bf16.mxu0 0
  %64 = vmatpush1.bf16.msra.mxu0 0
  %65 = vmatprep.subr.bf16.mxu0 0
  %66 = vmatpush1.bf16.msra.mxu0 0
  %67 = vmatprep.subr.bf16.mxu0 0
  %68 = vmatpush1.bf16.msra.mxu0 0
  %69 = vmatprep.subr.bf16.mxu0 0
  %70 = vmatpush1.bf16.msra.mxu0 0
  %71 = vmatprep.subr.bf16.mxu0 0
  %72 = vmatpush1.bf16.msra.mxu0 0
  %73 = vmatprep.subr.bf16.mxu0 0
  %74 = vmatpush1.bf16.msra.mxu0 0
  %75 = vmatprep.subr.bf16.mxu0 0
  %76 = vmatpush1.bf16.msra.mxu0 0
  %77 = vmatprep.subr.bf16.mxu0 0
  %78 = vmatpush1.bf16.msra.mxu0 0
  %79 = vmatprep.mubr.bf16.mxu0 0
  %80 = vmatmul.mubr.bf16.gmra.mrb[0].mxu0 %v41
  %v81 = vpop.f32.mrb[0].mxu0
  %v82 = vadd.f32 0.0, %v81
  %v83 = vpop.f32.mrb[0].mxu0
  %v84 = vpop.f32.mrb[0].mxu0
  %v85 = vpop.f32.mrb[0].mxu0
  %86 = vdwg.mxu0
  %v87 = vpack.c.bf16 %v82, %v82
  %88 = vst [vmem:[%s4] sm:$0xf] %v87
  %v89 = vadd.f32 %v82, 0.0
  %v90 = vmul.f32 %v82, %v82
  %v91 = vadd.f32 %v90, 0.0
  %92 = vst [vmem:[%s5] sm:$0xff] %v89
  %93 = vst [vmem:[%s5 + $0x8] sm:$0xff] %v91
  // Predicated region
  $region18: #{dilation_forward.5} parent=0 // pred_check
    _
  $region19: #{dilation_forward.5} parent=0 // pred_check_branch
    %95 = sbr.rel (0) target = $region21
  $region20: #{dilation_forward.5} parent=0 // pred_region
    _
  $region21: #{dilation_forward.5} parent=0 // pred_fallthru
    _
  // Predicated region
  $region22: #{dilation_forward.5} parent=0 // pred_check
    _
  $region23: #{dilation_forward.5} parent=0 // pred_check_branch
    %97 = sbr.rel (0) target = $region25
  $region24: #{dilation_forward.5} parent=0 // pred_region
    _
  $region25: #{dilation_forward.5} parent=0 // pred_fallthru
    _
  // Predicated region
  $region26: #{dilation_forward.5} parent=0 // pred_check
    _
  $region27: #{dilation_forward.5} parent=0 // pred_check_branch
    %99 = sbr.rel (0) target = $region29
  $region28: #{dilation_forward.5} parent=0 // pred_region
    _
  $region29: #{dilation_forward.5} parent=0 // pred_fallthru
    _
  // Predicated region
  $region30: #{dilation_forward.5} parent=0 // pred_check
    _
  $region31: #{dilation_forward.5} parent=0 // pred_check_branch
    %101 = sbr.rel (0) target = $region33
  $region32: #{dilation_forward.5} parent=0 // pred_region
    _
  $region33: #{dilation_forward.5} parent=0 // pred_fallthru
    _

</llo_original>
